<compile_context>
chip_gen: v7x
topology: tpu7x:2x2x1
jax: 0.10.0
libtpu: 0.0.40
codegen_flags: <defaults>
</compile_context>

<pallas_src>
import functools

import jax
import jax.numpy as jnp
from jax.experimental import pallas as pl
from jax.experimental.pallas import tpu as pltpu


def _focal_loss_kernel(logits_ref, targets_ref, out_ref, acc_ref, *,
                       gamma, ignore_index, H, th):
    """One grid step = one image n, one row band [hi*th, hi*th + th).

    logits_ref : (1, C, th, W) float   — NCHW block, W is the lane (minor) axis
    targets_ref: (1, th, W)    int32
    out_ref    : (1, 1)        float32 — total summed loss (written on last step)
    acc_ref    : (th, W)       float32 — vector accumulator, persists across grid
    """
    step = pl.program_id(0) * pl.num_programs(1) + pl.program_id(1)
    nsteps = pl.num_programs(0) * pl.num_programs(1)

    x = logits_ref[0].astype(jnp.float32)          # (C, th, W)
    t = targets_ref[0]                             # (th, W) int32
    C, thb, W = x.shape

    # log-softmax over the class axis (axis 0).  C is small, so these are
    # unrolled cross-vreg VPU max/add chains — every lane stays busy.
    m = jnp.max(x, axis=0)                         # (th, W)
    z = x - m[None]                                # (C, th, W)
    sumexp = jnp.sum(jnp.exp(z), axis=0)           # (th, W)

    # gather z at the target class: compare-against-iota + select + VPU sum
    cls = jax.lax.broadcasted_iota(jnp.int32, (C, thb, W), 0)
    z_t = jnp.sum(jnp.where(cls == t[None], z, 0.0), axis=0)   # (th, W)

    logpt = z_t - jnp.log(sumexp)                  # (th, W)
    pt = jnp.exp(logpt)                            # pt == exp(logpt) exactly

    om = 1.0 - pt
    if gamma == 2:
        focal = om * om                            # two VPU muls, never pow->exp*log
    elif isinstance(gamma, int) and gamma >= 0:
        focal = jax.lax.integer_pow(om, gamma)
    else:
        focal = om ** gamma

    # TODO(synk): alpha is None in the module's default __init__; per-class
    # alpha weighting is therefore not implemented here.
    valid = t != ignore_index
    if H % th != 0:                                # mask padded rows of the last band
        hi = pl.program_id(1)
        row = jax.lax.broadcasted_iota(jnp.int32, (thb, W), 0) + hi * th
        valid = valid & (row < H)

    loss = jnp.where(valid, -focal * logpt, 0.0)   # (th, W)

    @pl.when(step == 0)
    def _():
        acc_ref[...] = jnp.zeros_like(acc_ref)
        out_ref[...] = jnp.zeros_like(out_ref)

    acc_ref[...] += loss                           # pure VPU add, no per-step reduce

    @pl.when(step == nsteps - 1)
    def _():
        out_ref[...] = jnp.sum(acc_ref[...], keepdims=True)   # one reduction, once


def _pick_row_tile(H, W, C, itemsize, tile_bytes):
    """Rows per band so a logits block is ~tile_bytes; multiple of 8 (or full H)."""
    rows = max(1, tile_bytes // max(1, C * W * itemsize))
    th = max(8, (rows // 8) * 8)
    return H if th >= H else th


def focal_loss(outputs, targets, *, gamma=2, ignore_index=0,
               tile_bytes=2 * 1024 * 1024):
    """outputs: (N, C, H, W) float logits (f32 or bf16); targets: (N, H, W) ints."""
    N, C, H, W = outputs.shape
    itemsize = jnp.dtype(outputs.dtype).itemsize
    th = _pick_row_tile(H, W, C, itemsize, tile_bytes)
    n_h = pl.cdiv(H, th)
    targets = targets.astype(jnp.int32)

    kernel = functools.partial(
        _focal_loss_kernel, gamma=gamma, ignore_index=ignore_index, H=H, th=th)

    total = pl.pallas_call(
        kernel,
        out_shape=jax.ShapeDtypeStruct((1, 1), jnp.float32),
        grid=(N, n_h),
        in_specs=[
            pl.BlockSpec((1, C, th, W), lambda n, h: (n, 0, h, 0)),
            pl.BlockSpec((1, th, W), lambda n, h: (n, h, 0)),
        ],
        # output block is resident across the whole (reduction) grid
        out_specs=pl.BlockSpec((1, 1), lambda n, h: (0, 0)),
        scratch_shapes=[pltpu.VMEM((th, W), jnp.float32)],
        compiler_params=pltpu.CompilerParams(
            dimension_semantics=("arbitrary", "arbitrary")),
    )(outputs, targets)

    # torch .mean() divides by the total number of pixels (ignored ones included)
    return total[0, 0] / jnp.float32(N * H * W)


def _focal_loss_ref(outputs, targets, *, gamma=2, ignore_index=0):
    """Pure-JAX reference matching the PyTorch module semantics."""
    logp = jax.nn.log_softmax(outputs.astype(jnp.float32), axis=1)     # (N,C,H,W)
    p = jnp.exp(logp)
    t = targets.astype(jnp.int32)
    logpt = jnp.take_along_axis(logp, t[:, None], axis=1)[:, 0]        # (N,H,W)
    pt = jnp.take_along_axis(p, t[:, None], axis=1)[:, 0]
    loss = -1.0 * (1.0 - pt) ** gamma * logpt
    loss = loss * (t != ignore_index).astype(jnp.float32)
    return jnp.mean(loss)


if __name__ == "__main__":
    key = jax.random.PRNGKey(0)
    k1, k2 = jax.random.split(key)

    N, C, H, W = 2, 4, 16, 16
    outputs = jax.random.normal(k1, (N, C, H, W), dtype=jnp.float32)
    targets = jax.random.randint(k2, (N, H, W), 0, C, dtype=jnp.int32)

    loss = focal_loss(outputs, targets, gamma=2, ignore_index=0)
    loss = jax.block_until_ready(loss)

    ref = _focal_loss_ref(outputs, targets, gamma=2, ignore_index=0)
    assert jnp.allclose(loss, ref, atol=1e-5, rtol=1e-5), (loss, ref)

    print("KERNEL_OK")
</pallas_src>

<mosaic_0001>
module attributes {stable_mosaic.version = 11 : i64} {
  func.func @_focal_loss_kernel(%arg0: i32, %arg1: i32, %arg2: memref<1x4x16x16xf32, #tpu.memory_space<vmem>>, %arg3: memref<1x16x16xi32, #tpu.memory_space<vmem>>, %arg4: memref<1x1xf32, #tpu.memory_space<vmem>>, %arg5: memref<16x16xf32, #tpu.memory_space<vmem>>) attributes {dimension_semantics = [#tpu.dimension_semantics<arbitrary>, #tpu.dimension_semantics<arbitrary>], iteration_bounds = array<i64: 2, 1>, scalar_prefetch = 0 : i64, scratch_operands = 1 : i64, tpu.core_type = #tpu.core_type<tc>, window_params = [{transform_indices = @transform_0, window_bounds = array<i64: 1, 4, 16, 16>}, {transform_indices = @transform_1, window_bounds = array<i64: 1, 16, 16>}, {pipeline_mode = #tpu.pipeline_mode<synchronous>, transform_indices = @transform_2, window_bounds = array<i64: 1, 1>}]} {
    %c1_i32 = arith.constant 1 : i32
    %0 = arith.muli %arg0, %c1_i32 : i32
    %1 = arith.addi %0, %arg1 : i32
    %c0 = arith.constant 0 : index
    %c0_0 = arith.constant 0 : index
    %c0_1 = arith.constant 0 : index
    %c0_2 = arith.constant 0 : index
    %2 = vector.load %arg2[%c0, %c0_0, %c0_1, %c0_2] : memref<1x4x16x16xf32, #tpu.memory_space<vmem>>, vector<1x4x16x16xf32>
    %3 = vector.shape_cast %2 : vector<1x4x16x16xf32> to vector<4x16x16xf32>
    %c0_3 = arith.constant 0 : index
    %c0_4 = arith.constant 0 : index
    %c0_5 = arith.constant 0 : index
    %4 = vector.load %arg3[%c0_3, %c0_4, %c0_5] : memref<1x16x16xi32, #tpu.memory_space<vmem>>, vector<1x16x16xi32>
    %5 = vector.shape_cast %4 : vector<1x16x16xi32> to vector<16x16xi32>
    %cst = arith.constant dense<0xFF800000> : vector<16x16xf32>
    %6 = vector.multi_reduction <maximumf>, %3, %cst [0] : vector<4x16x16xf32> to vector<16x16xf32>
    %7 = vector.shape_cast %6 : vector<16x16xf32> to vector<1x16x16xf32>
    %8 = vector.broadcast %7 : vector<1x16x16xf32> to vector<4x16x16xf32>
    %9 = arith.subf %3, %8 : vector<4x16x16xf32>
    %10 = math.exp %9 : vector<4x16x16xf32>
    %cst_6 = arith.constant dense<0.000000e+00> : vector<16x16xf32>
    %11 = vector.multi_reduction <add>, %10, %cst_6 [0] : vector<4x16x16xf32> to vector<16x16xf32>
    %12 = tpu.iota {dimensions = array<i32: 0>} : vector<4x16x16xi32>
    %13 = vector.shape_cast %5 : vector<16x16xi32> to vector<1x16x16xi32>
    %14 = vector.broadcast %13 : vector<1x16x16xi32> to vector<4x16x16xi32>
    %15 = arith.cmpi eq, %12, %14 : vector<4x16x16xi32>
    %cst_7 = arith.constant 0.000000e+00 : f32
    %16 = vector.broadcast %cst_7 : f32 to vector<4x16x16xf32>
    %17 = arith.select %15, %9, %16 : vector<4x16x16xi1>, vector<4x16x16xf32>
    %cst_8 = arith.constant dense<0.000000e+00> : vector<16x16xf32>
    %18 = vector.multi_reduction <add>, %17, %cst_8 [0] : vector<4x16x16xf32> to vector<16x16xf32>
    %19 = math.log %11 : vector<16x16xf32>
    %20 = arith.subf %18, %19 : vector<16x16xf32>
    %21 = math.exp %20 : vector<16x16xf32>
    %cst_9 = arith.constant 1.000000e+00 : f32
    %22 = vector.broadcast %cst_9 : f32 to vector<16x16xf32>
    %23 = arith.subf %22, %21 : vector<16x16xf32>
    %24 = arith.mulf %23, %23 : vector<16x16xf32>
    %c0_i32 = arith.constant 0 : i32
    %25 = vector.broadcast %c0_i32 : i32 to vector<16x16xi32>
    %26 = arith.cmpi ne, %5, %25 : vector<16x16xi32>
    %cst_10 = arith.constant 0.000000e+00 : f32
    %27 = vector.broadcast %cst_10 : f32 to vector<16x16xf32>
    %28 = arith.subf %27, %24 : vector<16x16xf32>
    %29 = arith.mulf %28, %20 : vector<16x16xf32>
    %cst_11 = arith.constant 0.000000e+00 : f32
    %30 = vector.broadcast %cst_11 : f32 to vector<16x16xf32>
    %31 = arith.select %26, %29, %30 : vector<16x16xi1>, vector<16x16xf32>
    %c0_i32_12 = arith.constant 0 : i32
    %32 = arith.cmpi eq, %1, %c0_i32_12 : i32
    %33 = arith.extui %32 : i1 to i32
    %c0_i32_13 = arith.constant 0 : i32
    %34 = arith.cmpi ne, %33, %c0_i32_13 : i32
    scf.if %34 {
      %cst_20 = arith.constant 0.000000e+00 : f32
      %41 = vector.broadcast %cst_20 : f32 to vector<16x16xf32>
      %c0_21 = arith.constant 0 : index
      %c0_22 = arith.constant 0 : index
      %42 = vector.load %arg5[%c0_21, %c0_22] : memref<16x16xf32, #tpu.memory_space<vmem>>, vector<16x16xf32>
      tpu.vector_store %arg5[%c0_21, %c0_22], %41 {strides = array<i32>} : memref<16x16xf32, #tpu.memory_space<vmem>>, vector<16x16xf32>,
      %cst_23 = arith.constant 0.000000e+00 : f32
      %43 = vector.broadcast %cst_23 : f32 to vector<1x1xf32>
      %c0_24 = arith.constant 0 : index
      %c0_25 = arith.constant 0 : index
      %44 = vector.load %arg4[%c0_24, %c0_25] : memref<1x1xf32, #tpu.memory_space<vmem>>, vector<1x1xf32>
      tpu.vector_store %arg4[%c0_24, %c0_25], %43 {strides = array<i32>} : memref<1x1xf32, #tpu.memory_space<vmem>>, vector<1x1xf32>,
    } else {
    }
    %c0_14 = arith.constant 0 : index
    %c0_15 = arith.constant 0 : index
    %35 = vector.load %arg5[%c0_14, %c0_15] : memref<16x16xf32, #tpu.memory_space<vmem>>, vector<16x16xf32>
    %36 = arith.addf %35, %31 : vector<16x16xf32>
    %c0_16 = arith.constant 0 : index
    %c0_17 = arith.constant 0 : index
    %37 = vector.load %arg5[%c0_16, %c0_17] : memref<16x16xf32, #tpu.memory_space<vmem>>, vector<16x16xf32>
    tpu.vector_store %arg5[%c0_16, %c0_17], %36 {strides = array<i32>} : memref<16x16xf32, #tpu.memory_space<vmem>>, vector<16x16xf32>,
    %c1_i32_18 = arith.constant 1 : i32
    %38 = arith.cmpi eq, %1, %c1_i32_18 : i32
    %39 = arith.extui %38 : i1 to i32
    %c0_i32_19 = arith.constant 0 : i32
    %40 = arith.cmpi ne, %39, %c0_i32_19 : i32
    scf.if %40 {
      %c0_20 = arith.constant 0 : index
      %c0_21 = arith.constant 0 : index
      %41 = vector.load %arg5[%c0_20, %c0_21] : memref<16x16xf32, #tpu.memory_space<vmem>>, vector<16x16xf32>
      %42 = vector.shape_cast %41 : vector<16x16xf32> to vector<1x16x16xf32>
      %cst_22 = arith.constant dense<0.000000e+00> : vector<1xf32>
      %43 = vector.multi_reduction <add>, %42, %cst_22 [1, 2] : vector<1x16x16xf32> to vector<1xf32>
      %44 = vector.shape_cast %43 : vector<1xf32> to vector<1x1x1xf32>
      %45 = vector.extract %44[0, 0, 0] : f32 from vector<1x1x1xf32>
      %46 = vector.broadcast %45 : f32 to vector<1x1xf32>
      %c0_23 = arith.constant 0 : index
      %c0_24 = arith.constant 0 : index
      %47 = vector.load %arg4[%c0_23, %c0_24] : memref<1x1xf32, #tpu.memory_space<vmem>>, vector<1x1xf32>
      tpu.vector_store %arg4[%c0_23, %c0_24], %46 {strides = array<i32>} : memref<1x1xf32, #tpu.memory_space<vmem>>, vector<1x1xf32>,
    } else {
    }
    return
  }
  func.func @transform_0(%arg0: i32, %arg1: i32) -> (i32, i32, i32, i32) {
    %c0_i32 = arith.constant 0 : i32
    %c0_i32_0 = arith.constant 0 : i32
    %c0_i32_1 = arith.constant 0 : i32
    return %arg0, %c0_i32, %arg1, %c0_i32_0 : i32, i32, i32, i32
  }
  func.func @transform_1(%arg0: i32, %arg1: i32) -> (i32, i32, i32) {
    %c0_i32 = arith.constant 0 : i32
    %c0_i32_0 = arith.constant 0 : i32
    return %arg0, %arg1, %c0_i32 : i32, i32, i32
  }
  func.func @transform_2(%arg0: i32, %arg1: i32) -> (i32, i32) {
    %c0_i32 = arith.constant 0 : i32
    %c0_i32_0 = arith.constant 0 : i32
    %c0_i32_1 = arith.constant 0 : i32
    return %c0_i32, %c0_i32_0 : i32, i32
  }
}

</mosaic_0001>

<llo_original>
// kernel: tpu_custom_call.1
$region0: #{tpu_custom_call.1}
  #allocation0 [shape = 'u32[]', space=smem, size = 0x4, offset = 0x4, fixed_abs, tag = 'smem constant byte address 0x4 - core index']
  #allocation1 [shape = 'u32[144,128]{1,0:T(1,128)}', space=vmem, size = 0x12000, scoped, tag = 'internal scratch']
  #allocation2 [shape = 'f32[16,16]{1,0:T(8,128)}', space=vmem, size = 0x2000, scoped, tag = 'scratch operand']
  %s0 = inlined_call_operand.hbm [shape: f32[2,4,16,16], index: 0, kind: input, shape index: {}]
  %s1 = inlined_call_operand.hbm [shape: s32[2,16,16], index: 1, kind: input, shape index: {}]
  %s2 = inlined_call_operand.hbm [shape: f32[1,1], index: 2, kind: output, shape index: {}]
  %s3 = sld [smem:[#allocation0]]
  $region57: #{tpu_custom_call.1} parent=0
    _
  %s5 = ssub.s32 1, %s3
  %s6 = scalar_select 0, %s5, %s3
  $region1: #{tpu_custom_call.1} parent=0
    #allocation3 [shape = 'u8[65536]{0}', space=vmem, size = 0x10000, scoped, tag = 'input window, operand 0']
    #allocation4 [shape = 's32[2]{0}', space=sflag, size = 0x8, scoped, tag = 'scoped memory for tpu_custom_call.1']
    #allocation5 [shape = 's32[2]{0}', space=sflag, size = 0x8, scoped, tag = 'scoped memory for tpu_custom_call.1']
    #allocation6 [shape = 'u8[16384]{0}', space=vmem, size = 0x4000, scoped, tag = 'input window, operand 1']
    #allocation7 [shape = 's32[2]{0}', space=sflag, size = 0x8, scoped, tag = 'scoped memory for tpu_custom_call.1']
    #allocation8 [shape = 'u8[512]{0}', space=vmem, size = 0x400, scoped, tag = 'output window, operand 0, single buffered']
    %7 = vsyncpa [#allocation4], 0
    %s8 = scalar_lea.sflag [#allocation4], 1
    %9 = vsyncpa %s8, 0
    %10 = vsyncpa [#allocation7], 0
    %s11 = scalar_lea.sflag [#allocation7], 1
    %12 = vsyncpa %s11, 0
    %13 = vsyncpa [#allocation5], 0
    loop: start=0, step=1, limit=4
    $region2: #{tpu_custom_call.1} parent=1 // loop_pre_header
      _
    $region3: #{tpu_custom_call.1} parent=1 // loop_header
      %s15 = sphi 0, %s19
      %p16 = scmp.ge.s32.totalorder %s15, 4
      %s22 = sphi 0, %s34
      %s23 = sphi 0, %s30
      %s24 = sphi 0, %s22
      %s25 = sphi 0, %s23
      %s26 = sphi 0, %s24
      %s27 = sphi 0, %s25
      %s39 = sphi 0, %s41
      %s42 = sphi 0, %s39
      %s43 = sphi 0, %s42
      %s59 = sphi 0, %s43
      %s67 = sphi 0, %s69
      %s70 = sphi 0, %s67
      %s71 = sphi 0, %s70
      %s87 = sphi 0, %s71
      %s91 = sphi 0, %s91
      %s93 = sphi 0, %s91
      %s94 = sphi 0, %s93
      %s108 = sphi 0, %s94
    $region4: #{tpu_custom_call.1} parent=1 // loop_header_branch
      %18 = sbr.rel (%p16) target = $region8
    $region5: #{tpu_custom_call.1} parent=1 // loop_body
      %s20 = ssub.s32 %s15, 1
      %s21 = ssub.s32 %s15, 2
      %s28 = sadd.s32 1, %s23
      %p29 = scmp.ge.s32.totalorder %s28, 1
      %s30 = scalar_select %p29, 0, %s28
      %s31 = sadd.s32 1, %s22
      %s32 = scalar_select %p29, %s31, %s22
      %p33 = scmp.ge.s32.totalorder %s32, 2
      %s34 = scalar_select %p33, 0, %s32
      %s35 = ssub.s32 %s22, %s34
      %s36 = ssub.s32 %s23, %s30
      %s37 = sor.u32 %s35, %s36
      %p38 = scmp.eq.s32.totalorder %s37, 0
      %s40 = sadd.s32 %s39, 1
      %s41 = scalar_select %p38, %s39, %s40
      %p44 = pneg %p38
      %p45 = scmp.eq.s32.totalorder %s15, 1
      %p46 = por %p44, %p45
      %p47 = scmp.ne.s32.totalorder %s39, %s42
      %p48 = scmp.eq.s32.totalorder %s15, 0
      %p49 = por %p47, %p48
      %p50 = scmp.ne.s32.totalorder %s39, %s42
      %p51 = scmp.eq.s32.totalorder %s20, 1
      %p52 = por %p50, %p51
      %p53 = scmp.ne.s32.totalorder %s42, %s43
      %p54 = scmp.eq.s32.totalorder %s20, 0
      %p55 = por %p53, %p54
      %p56 = scmp.ne.s32.totalorder %s42, %s43
      %p57 = scmp.eq.s32.totalorder %s21, 1
      %p58 = por %p56, %p57
      %p60 = scmp.ne.s32.totalorder %s43, %s59
      %p61 = scmp.eq.s32.totalorder %s21, 0
      %p62 = por %p60, %p61
      %s63 = ssub.s32 %s22, %s34
      %s64 = ssub.s32 %s23, %s30
      %s65 = sor.u32 %s63, %s64
      %p66 = scmp.eq.s32.totalorder %s65, 0
      %s68 = sadd.s32 %s67, 1
      %s69 = scalar_select %p66, %s67, %s68
      %p72 = pneg %p66
      %p73 = scmp.eq.s32.totalorder %s15, 1
      %p74 = por %p72, %p73
      %p75 = scmp.ne.s32.totalorder %s67, %s70
      %p76 = scmp.eq.s32.totalorder %s15, 0
      %p77 = por %p75, %p76
      %p78 = scmp.ne.s32.totalorder %s67, %s70
      %p79 = scmp.eq.s32.totalorder %s20, 1
      %p80 = por %p78, %p79
      %p81 = scmp.ne.s32.totalorder %s70, %s71
      %p82 = scmp.eq.s32.totalorder %s20, 0
      %p83 = por %p81, %p82
      %p84 = scmp.ne.s32.totalorder %s70, %s71
      %p85 = scmp.eq.s32.totalorder %s21, 1
      %p86 = por %p84, %p85
      %p88 = scmp.ne.s32.totalorder %s71, %s87
      %p89 = scmp.eq.s32.totalorder %s21, 0
      %p90 = por %p88, %p89
      %s92 = sadd.s32 %s91, 1
      %p95 = scmp.eq.s32.totalorder %s15, 1
      %p96 = scmp.ne.s32.totalorder %s91, %s93
      %p97 = scmp.eq.s32.totalorder %s15, 0
      %p98 = por %p96, %p97
      %p99 = scmp.ne.s32.totalorder %s91, %s93
      %p100 = scmp.eq.s32.totalorder %s20, 1
      %p101 = por %p99, %p100
      %p102 = scmp.ne.s32.totalorder %s93, %s94
      %p103 = scmp.eq.s32.totalorder %s20, 0
      %p104 = por %p102, %p103
      %p105 = scmp.ne.s32.totalorder %s93, %s94
      %p106 = scmp.eq.s32.totalorder %s21, 1
      %p107 = por %p105, %p106
      %p109 = scmp.ne.s32.totalorder %s94, %s108
      %p110 = scmp.eq.s32.totalorder %s21, 0
      %p111 = por %p109, %p110
      %p112 = scmp.le.s32.totalorder 1, %s15
      %p113 = scmp.lt.s32.totalorder %s15, 3
      %p114 = pnand %p112, %p113
      %p115 = pneg %p114
      // Predicated region
      $region9: #{tpu_custom_call.1} parent=5 // pred_check
        _
      $region10: #{tpu_custom_call.1} parent=5 // pred_check_branch
        %117 = sbr.rel (%p114) target = $region12
      $region11: #{tpu_custom_call.1} parent=5 // pred_region
        %s118 = ssub.s32 %s15, 1
      $region12: #{tpu_custom_call.1} parent=5 // pred_fallthru
        _
      %p119 = scmp.lt.s32.totalorder %s15, 2
      // Predicated region
      $region13: #{tpu_custom_call.1} parent=5 // pred_check
        %p120 = pneg %p119
      $region14: #{tpu_custom_call.1} parent=5 // pred_check_branch
        %122 = sbr.rel (%p120) target = $region16
      $region15: #{tpu_custom_call.1} parent=5 // pred_region
        // Predicated region
        $region17: #{tpu_custom_call.1} parent=15 // pred_check
          %p123 = pneg %p49
        $region18: #{tpu_custom_call.1} parent=15 // pred_check_branch
          %125 = sbr.rel (%p123) target = $region20
        $region19: #{tpu_custom_call.1} parent=15 // pred_region
          %s126 = sand.u32 %s39, 1
          %s127 = scalar_lea.sflag [#allocation4], %s126
          %s128 = sand.u32 %s39, 1
          %s129 = smul.addr %s128, 64
          %s130 = scalar_lea.vmem [#allocation3], %s129
          %s131 = smul.u32 2, %s23
          %s133 = ssub.s32 1024, 1024
          %134 = vsyncadd %s127, %s133
          %s135 = smul.addr %s22, 8
          %s136 = sadd.s32 %s131, %s135
          %s137 = smul.addr %s136, 128
          %s138 = scalar_lea.hbm %s0, %s137
          %s139 = sshll.u32 %s130, 4
          %s140 = int_to_ptr.vmem [resolvable:$true] %s139
          %145 = dma.hbm_to_vmem [thread:$0]  %s138, 1024, %s140, %s127, 128, 128, 8
        $region20: #{tpu_custom_call.1} parent=15 // pred_fallthru
          _
        // Predicated region
        $region21: #{tpu_custom_call.1} parent=15 // pred_check
          %p146 = pneg %p77
        $region22: #{tpu_custom_call.1} parent=15 // pred_check_branch
          %148 = sbr.rel (%p146) target = $region24
        $region23: #{tpu_custom_call.1} parent=15 // pred_region
          %s149 = sand.u32 %s67, 1
          %s150 = scalar_lea.sflag [#allocation7], %s149
          %s151 = sand.u32 %s67, 1
          %s152 = smul.addr %s151, 16
          %s153 = scalar_lea.vmem [#allocation6], %s152
          %s154 = smul.u32 2, %s23
          %s156 = ssub.s32 256, 256
          %157 = vsyncadd %s150, %s156
          %s158 = smul.addr %s22, 2
          %s159 = sadd.s32 %s154, %s158
          %s160 = smul.addr %s159, 128
          %s161 = scalar_lea.hbm %s1, %s160
          %s162 = sshll.u32 %s153, 4
          %s163 = int_to_ptr.vmem [resolvable:$true] %s162
          %168 = dma.hbm_to_vmem [thread:$0]  %s161, 256, %s163, %s150, 128, 128, 8
        $region24: #{tpu_custom_call.1} parent=15 // pred_fallthru
          _
      $region16: #{tpu_custom_call.1} parent=5 // pred_fallthru
        _
      %p169 = scmp.le.s32.totalorder 1, %s15
      %p170 = scmp.lt.s32.totalorder %s15, 3
      %p171 = pnand %p169, %p170
      %p172 = pneg %p171
      // Predicated region
      $region25: #{tpu_custom_call.1} parent=5 // pred_check
        _
      $region26: #{tpu_custom_call.1} parent=5 // pred_check_branch
        %174 = sbr.rel (%p171) target = $region28
      $region27: #{tpu_custom_call.1} parent=5 // pred_region
        %s175 = ssub.s32 %s15, 1
        %s176 = sand.u32 %s42, 1
        %s177 = scalar_lea.sflag [#allocation4], %s176
        %s178 = sand.u32 %s42, 1
        %s179 = smul.addr %s178, 64
        %s180 = scalar_lea.vmem [#allocation3], %s179
        // Predicated region
        $region29: #{tpu_custom_call.1} parent=27 // pred_check
          %p181 = pneg %p55
        $region30: #{tpu_custom_call.1} parent=27 // pred_check_branch
          %183 = sbr.rel (%p181) target = $region32
        $region31: #{tpu_custom_call.1} parent=27 // pred_region
          %184 = dma.done %s177, 1024
        $region32: #{tpu_custom_call.1} parent=27 // pred_fallthru
          _
        %s185 = sand.u32 %s70, 1
        %s186 = scalar_lea.sflag [#allocation7], %s185
        %s187 = sand.u32 %s70, 1
        %s188 = smul.addr %s187, 16
        %s189 = scalar_lea.vmem [#allocation6], %s188
        // Predicated region
        $region33: #{tpu_custom_call.1} parent=27 // pred_check
          %p190 = pneg %p83
        $region34: #{tpu_custom_call.1} parent=27 // pred_check_branch
          %192 = sbr.rel (%p190) target = $region36
        $region35: #{tpu_custom_call.1} parent=27 // pred_region
          %193 = dma.done %s186, 256
        $region36: #{tpu_custom_call.1} parent=27 // pred_fallthru
          _
        %s194 = sand.u32 %s42, 1
        %s195 = scalar_lea.sflag [#allocation4], %s194
        %s196 = sand.u32 %s42, 1
        %s197 = smul.addr %s196, 64
        %s198 = scalar_lea.vmem [#allocation3], %s197
        %p199 = pneg %p55
        %p200 = pneg %p52
        %s201 = sand.u32 %s70, 1
        %s202 = scalar_lea.sflag [#allocation7], %s201
        %s203 = sand.u32 %s70, 1
        %s204 = smul.addr %s203, 16
        %s205 = scalar_lea.vmem [#allocation6], %s204
        %p206 = pneg %p83
        %p207 = pneg %p80
        %p208 = pneg %p104
        %p209 = pneg %p101
        %s210 = smul.u32 2, %s25
        %s211 = smul.u32 2, %s25
        %s212 = sadd.s32 %s24, %s25
        %v213 = vld [vmem:[%s180] sm:$0xff]
        %v214 = vld [vmem:[%s180 + $0x8] sm:$0xff]
        %v215 = vld [vmem:[%s180 + $0x10] sm:$0xff]
        %v216 = vld [vmem:[%s180 + $0x18] sm:$0xff]
        %v217 = vld [vmem:[%s180 + $0x20] sm:$0xff]
        %v218 = vld [vmem:[%s180 + $0x28] sm:$0xff]
        %v219 = vld [vmem:[%s180 + $0x30] sm:$0xff]
        %v220 = vld [vmem:[%s180 + $0x38] sm:$0xff]
        %v221 = vld [vmem:[%s189] sm:$0xff]
        %v222 = vld [vmem:[%s189 + $0x8] sm:$0xff]
        %vm223 = vcmask 130048
        %v224 = vsel %vm223, %v213, -inf
        %v225 = vsel %vm223, %v215, -inf
        %v226 = vsel %vm223, %v217, -inf
        %v227 = vmax.f32 %v224, %v226
        %v228 = vsel %vm223, %v219, -inf
        %v229 = vmax.f32 %v225, %v228
        %v230 = vmax.f32 %v227, %v229
        %v231 = vsel %vm223, %v214, -inf
        %v232 = vsel %vm223, %v216, -inf
        %v233 = vsel %vm223, %v218, -inf
        %v234 = vmax.f32 %v231, %v233
        %v235 = vsel %vm223, %v220, -inf
        %v236 = vmax.f32 %v232, %v235
        %v237 = vmax.f32 %v234, %v236
        %v238 = vsub.f32 %v213, %v230
        %v239 = vsub.f32 %v214, %v237
        %v240 = vsub.f32 %v215, %v230
        %v241 = vsub.f32 %v216, %v237
        %v242 = vsub.f32 %v217, %v230
        %v243 = vsub.f32 %v218, %v237
        %v244 = vsub.f32 %v219, %v230
        %v245 = vsub.f32 %v220, %v237
        %v246 = vmul.f32 %v238, 1.442695
        %v247 = vpow.pop %v246
        %v248 = vmul.f32 %v239, 1.442695
        %v249 = vpow.pop %v248
        %v250 = vmul.f32 %v240, 1.442695
        %v251 = vpow.pop %v250
        %v252 = vmul.f32 %v241, 1.442695
        %v253 = vpow.pop %v252
        %v254 = vmul.f32 %v242, 1.442695
        %v255 = vpow.pop %v254
        %v256 = vmul.f32 %v243, 1.442695
        %v257 = vpow.pop %v256
        %v258 = vmul.f32 %v244, 1.442695
        %v259 = vpow.pop %v258
        %v260 = vmul.f32 %v245, 1.442695
        %v261 = vpow.pop %v260
        %v262 = vsel %vm223, %v247, 0.0
        %v263 = vsel %vm223, %v251, 0.0
        %v264 = vadd.f32 %v262, %v263
        %v265 = vsel %vm223, %v255, 0.0
        %v266 = vadd.f32 %v264, %v265
        %v267 = vsel %vm223, %v259, 0.0
        %v268 = vadd.f32 %v266, %v267
        %v269 = vsel %vm223, %v249, 0.0
        %v270 = vsel %vm223, %v253, 0.0
        %v271 = vadd.f32 %v269, %v270
        %v272 = vsel %vm223, %v257, 0.0
        %v273 = vadd.f32 %v271, %v272
        %v274 = vsel %vm223, %v261, 0.0
        %v275 = vadd.f32 %v273, %v274
        %vm276 = vcmp.eq.s32.totalorder %v221, 0
        %vm277 = vcmp.eq.s32.totalorder %v222, 0
        %vm278 = vcmp.eq.s32.totalorder %v221, 1
        %vm279 = vcmp.eq.s32.totalorder %v222, 1
        %vm280 = vcmp.eq.s32.totalorder %v221, 2
        %vm281 = vcmp.eq.s32.totalorder %v222, 2
        %vm282 = vcmp.eq.s32.totalorder %v221, 3
        %vm283 = vcmp.eq.s32.totalorder %v222, 3
        %v284 = vsel %vm276, %v238, 0.0
        %v285 = vsel %vm277, %v239, 0.0
        %v286 = vsel %vm278, %v240, 0.0
        %v287 = vsel %vm279, %v241, 0.0
        %v288 = vsel %vm280, %v242, 0.0
        %v289 = vsel %vm281, %v243, 0.0
        %v290 = vsel %vm282, %v244, 0.0
        %v291 = vsel %vm283, %v245, 0.0
        %v292 = vsel %vm223, %v284, 0.0
        %v293 = vsel %vm223, %v286, 0.0
        %v294 = vadd.f32 %v292, %v293
        %v295 = vsel %vm223, %v288, 0.0
        %v296 = vadd.f32 %v294, %v295
        %v297 = vsel %vm223, %v290, 0.0
        %v298 = vadd.f32 %v296, %v297
        %v299 = vsel %vm223, %v285, 0.0
        %v300 = vsel %vm223, %v287, 0.0
        %v301 = vadd.f32 %v299, %v300
        %v302 = vsel %vm223, %v289, 0.0
        %v303 = vadd.f32 %v301, %v302
        %v304 = vsel %vm223, %v291, 0.0
        %v305 = vadd.f32 %v303, %v304
        %v306 = vlog2.pop %v268
        %v307 = vmul.f32 %v306, 0.6931472
        %v308 = vlog2.pop %v275
        %v309 = vmul.f32 %v308, 0.6931472
        %v310 = vsub.f32 %v298, %v307
        %v311 = vsub.f32 %v305, %v309
        %v312 = vmul.f32 %v310, 1.442695
        %v313 = vpow.pop %v312
        %v314 = vmul.f32 %v311, 1.442695
        %v315 = vpow.pop %v314
        %v316 = vsub.f32 1.0, %v313
        %v317 = vsub.f32 1.0, %v315
        %v318 = vmul.f32 %v316, %v316
        %v319 = vmul.f32 %v317, %v317
        %vm320 = vcmp.ne.s32.totalorder %v221, 0
        %vm321 = vcmp.ne.s32.totalorder %v222, 0
        %v322 = vsub.f32 0.0, %v318
        %v323 = vsub.f32 0.0, %v319
        %v324 = vmul.f32 %v322, %v310
        %v325 = vmul.f32 %v323, %v311
        %v326 = vsel %vm320, %v324, 0.0
        %v327 = vsel %vm321, %v325, 0.0
        %p328 = scmp.eq.s32.totalorder %s212, 0
        // Predicated region
        $region37: #{tpu_custom_call.1} parent=27 // pred_check
          %p329 = pneg %p328
        $region38: #{tpu_custom_call.1} parent=27 // pred_check_branch
          %331 = sbr.rel (%p329) target = $region40
        $region39: #{tpu_custom_call.1} parent=27 // pred_region
          %332 = vst.msk [vmem:[#allocation2] sm:$0xff] %vm223, 0.0
          %333 = vst.msk [vmem:[#allocation2 + $0x8] sm:$0xff] %vm223, 0.0
          %vm334 = vcmask 0
          %335 = vst.msk [vmem:[#allocation8] sm:$0x1] %vm334, 0.0
        $region40: #{tpu_custom_call.1} parent=27 // pred_fallthru
          _
        %v336 = vld [vmem:[#allocation2] sm:$0xff]
        %v337 = vld [vmem:[#allocation2 + $0x8] sm:$0xff]
        %v338 = vadd.f32 %v336, %v326
        %v339 = vadd.f32 %v337, %v327
        %340 = vst.msk [vmem:[#allocation2] sm:$0xff] %vm223, %v338
        %341 = vst.msk [vmem:[#allocation2 + $0x8] sm:$0xff] %vm223, %v339
        %p342 = scmp.eq.s32.totalorder %s212, 1
        // Predicated region
        $region41: #{tpu_custom_call.1} parent=27 // pred_check
          %p343 = pneg %p342
        $region42: #{tpu_custom_call.1} parent=27 // pred_check_branch
          %345 = sbr.rel (%p343) target = $region44
        $region43: #{tpu_custom_call.1} parent=27 // pred_region
          %v346 = vld [vmem:[#allocation2] sm:$0xff]
          %v347 = vld [vmem:[#allocation2 + $0x8] sm:$0xff]
          %v348 = vsel %vm223, %v346, 0.0
          %v349 = vsel %vm223, %v347, 0.0
          %v350 = vadd.f32 %v348, %v349
          %351 = vadd.xlane.f32.xlu0 %v350
          %v352 = vpop.xlane.xlu0 %351
          %v353 = vrot.slane %v352, 4
          %v354 = vadd.f32 %v352, %v353
          %v355 = vrot.slane %v354, 2
          %v356 = vadd.f32 %v354, %v355
          %v357 = vrot.slane %v356, 1
          %v358 = vadd.f32 %v356, %v357
          %s359 = vtos %v358
          %v360 = vstv %s359
          %vm361 = vcmask 0
          %362 = vst.msk [vmem:[#allocation8] sm:$0x1] %vm361, %v360
        $region44: #{tpu_custom_call.1} parent=27 // pred_fallthru
          _
        // Predicated region
        $region45: #{tpu_custom_call.1} parent=27 // pred_check
          %p363 = pneg %p101
        $region46: #{tpu_custom_call.1} parent=27 // pred_check_branch
          %365 = sbr.rel (%p363) target = $region48
        $region47: #{tpu_custom_call.1} parent=27 // pred_region
          %s367 = ssub.s32 16, 16
          %368 = vsyncadd [#allocation5], %s367
          %s370 = sshll.u32 [#allocation8], 4
          %s371 = int_to_ptr.vmem [resolvable:$true] %s370
          %373 = dma.vmem_to_hbm [thread:$0]  %s371, 16, %s2, [#allocation5]
        $region48: #{tpu_custom_call.1} parent=27 // pred_fallthru
          _
        // Predicated region
        $region49: #{tpu_custom_call.1} parent=27 // pred_check
          %p374 = pneg %p101
        $region50: #{tpu_custom_call.1} parent=27 // pred_check_branch
          %376 = sbr.rel (%p374) target = $region52
        $region51: #{tpu_custom_call.1} parent=27 // pred_region
          %377 = dma.done [#allocation5], 16
        $region52: #{tpu_custom_call.1} parent=27 // pred_fallthru
          _
      $region28: #{tpu_custom_call.1} parent=5 // pred_fallthru
        _
      %p378 = scmp.le.s32.totalorder 2, %s15
      // Predicated region
      $region53: #{tpu_custom_call.1} parent=5 // pred_check
        %p379 = pneg %p378
      $region54: #{tpu_custom_call.1} parent=5 // pred_check_branch
        %381 = sbr.rel (%p379) target = $region56
      $region55: #{tpu_custom_call.1} parent=5 // pred_region
        %s382 = ssub.s32 %s15, 2
      $region56: #{tpu_custom_call.1} parent=5 // pred_fallthru
        _
    $region6: #{tpu_custom_call.1} parent=1 // loop_footer
      %s19 = sadd.s32 1, %s15
    $region7: #{tpu_custom_call.1} parent=1 // loop_footer_branch
      %14 = sbr.rel target = $region3
    $region8: #{tpu_custom_call.1} parent=1 // loop_exit
      _
    %383 = vsyncpa [#allocation4], 1
    %s384 = scalar_lea.sflag [#allocation4], 1
    %385 = vsyncpa %s384, 1
    %386 = vsyncpa [#allocation7], 1
    %s387 = scalar_lea.sflag [#allocation7], 1
    %388 = vsyncpa %s387, 1
    %389 = vsyncpa [#allocation5], 1
    %s390 = scalar_lea.sflag [#allocation5], 1
    %391 = vsyncpa %s390, 1

</llo_original>
